<compile_context>
chip_gen: v7x
topology: tpu7x:2x2x1
jax: 0.10.0
libtpu: 0.0.40
codegen_flags: <defaults>
</compile_context>

<pallas_src>
import jax
import jax.numpy as jnp
from jax.experimental import pallas as pl
from jax.experimental.pallas import tpu as pltpu


def _sublane_multiple(dtype) -> int:
    """Minimum second-to-last block multiple for a given dtype."""
    itemsize = jnp.dtype(dtype).itemsize
    return {4: 8, 2: 16, 1: 32}.get(itemsize, 8)


def _make_kernel(n_samples: int, tile_r: int):
    def kernel(y_ref, o_ref):
        # y_ref: (tile_r, C) block in VMEM; o_ref: (1, 8, 128) f32 block.
        y = y_ref[...].astype(jnp.float32)

        # Numerically stable softmax reductions along the class (lane) axis.
        m = jnp.max(y, axis=1, keepdims=True)          # (tile_r, 1)
        e = jnp.exp(y - m)                             # (tile_r, C)
        s1 = jnp.sum(e, axis=1, keepdims=True)         # (tile_r, 1)
        s2 = jnp.sum(e * e, axis=1, keepdims=True)     # (tile_r, 1)

        # sum_c p*(1-p) = 1 - sum_c p^2 = 1 - s2 / s1^2  (p never materialized)
        l = 1.0 - s2 / (s1 * s1)                       # (tile_r, 1)

        # Mask rows past the true n_samples (last, partially-filled tile).
        row = (jax.lax.broadcasted_iota(jnp.int32, (tile_r, 1), 0)
               + pl.program_id(0) * tile_r)
        l = jnp.where(row < n_samples, l, 0.0)

        # Per-tile partial sum, broadcast into a lane-dense (8,128) block.
        tile_sum = jnp.sum(l)
        o_ref[...] = jnp.full((1, 8, 128), tile_sum, dtype=jnp.float32)

    return kernel


def loss_unsupervised(y_pred, y_true=None, tile_rows: int = 2048):
    """Pallas equivalent of LossUnsupervisedNew.forward. y_true is ignored."""
    n_samples, n_classes = y_pred.shape

    sub = _sublane_multiple(y_pred.dtype)
    # Tile of ~2048 rows (multiple of the dtype's sublane packing), capped at
    # the (rounded-up) number of rows for small inputs.
    n_rounded = ((n_samples + sub - 1) // sub) * sub
    tile_r = int(min(max(tile_rows // sub * sub, sub), n_rounded))
    num_tiles = (n_samples + tile_r - 1) // tile_r

    partials = pl.pallas_call(
        _make_kernel(n_samples, tile_r),
        out_shape=jax.ShapeDtypeStruct((num_tiles, 8, 128), jnp.float32),
        grid=(num_tiles,),
        in_specs=[
            pl.BlockSpec((tile_r, n_classes), lambda i: (i, 0)),
        ],
        out_specs=pl.BlockSpec((1, 8, 128), lambda i: (i, 0, 0)),
        compiler_params=pltpu.CompilerParams(
            dimension_semantics=("parallel",),
        ),
    )(y_pred)

    # Tiny final reduction over per-tile partials (num_tiles scalars).
    return jnp.sum(partials[:, 0, 0]) / jnp.float32(n_samples)


def loss_unsupervised_ref(y_pred, y_true=None):
    """Pure-JAX reference for validation."""
    p = jax.nn.softmax(y_pred.astype(jnp.float32), axis=1)
    l = jnp.sum(p * (1.0 - p), axis=1)
    return jnp.mean(l)


if __name__ == "__main__":
    key = jax.random.PRNGKey(0)
    k1, k2, k3 = jax.random.split(key, 3)

    # Case 1: small, evenly tiled shape (matches the module's expected layout).
    n_samples, n_classes = 8, 32
    y_pred = jax.random.normal(k1, (n_samples, n_classes), dtype=jnp.float32)
    y_true = jax.random.randint(k2, (n_samples,), 0, n_classes)  # unused

    loss = loss_unsupervised(y_pred, y_true)
    jax.block_until_ready(loss)
    ref = loss_unsupervised_ref(y_pred, y_true)
    assert jnp.allclose(loss, ref, rtol=1e-5, atol=1e-5), (loss, ref)

    # Case 2: ragged row count to exercise multi-tile + remainder masking.
    y_pred2 = jax.random.normal(k3, (50, 10), dtype=jnp.float32)
    loss2 = loss_unsupervised(y_pred2, None, tile_rows=16)
    jax.block_until_ready(loss2)
    ref2 = loss_unsupervised_ref(y_pred2)
    assert jnp.allclose(loss2, ref2, rtol=1e-5, atol=1e-5), (loss2, ref2)

    print("KERNEL_OK")
</pallas_src>

<mosaic_0001>
module attributes {stable_mosaic.version = 11 : i64} {
  func.func @kernel(%arg0: i32, %arg1: memref<8x32xf32, #tpu.memory_space<vmem>>, %arg2: memref<1x8x128xf32, #tpu.memory_space<vmem>>) attributes {dimension_semantics = [#tpu.dimension_semantics<parallel>], iteration_bounds = array<i64: 1>, scalar_prefetch = 0 : i64, scratch_operands = 0 : i64, tpu.core_type = #tpu.core_type<tc>, window_params = [{transform_indices = @transform_0, window_bounds = array<i64: 8, 32>}, {transform_indices = @transform_1, window_bounds = array<i64: 1, 8, 128>}]} {
    %c0 = arith.constant 0 : index
    %c0_0 = arith.constant 0 : index
    %0 = vector.load %arg1[%c0, %c0_0] : memref<8x32xf32, #tpu.memory_space<vmem>>, vector<8x32xf32>
    %cst = arith.constant dense<0xFF800000> : vector<8xf32>
    %1 = vector.multi_reduction <maximumf>, %0, %cst [1] : vector<8x32xf32> to vector<8xf32>
    %2 = vector.shape_cast %1 : vector<8xf32> to vector<8x1xf32>
    %3 = vector.broadcast %2 : vector<8x1xf32> to vector<8x32xf32>
    %4 = arith.subf %0, %3 : vector<8x32xf32>
    %5 = math.exp %4 : vector<8x32xf32>
    %cst_1 = arith.constant dense<0.000000e+00> : vector<8xf32>
    %6 = vector.multi_reduction <add>, %5, %cst_1 [1] : vector<8x32xf32> to vector<8xf32>
    %7 = vector.shape_cast %6 : vector<8xf32> to vector<8x1xf32>
    %8 = arith.mulf %5, %5 : vector<8x32xf32>
    %cst_2 = arith.constant dense<0.000000e+00> : vector<8xf32>
    %9 = vector.multi_reduction <add>, %8, %cst_2 [1] : vector<8x32xf32> to vector<8xf32>
    %10 = vector.shape_cast %9 : vector<8xf32> to vector<8x1xf32>
    %11 = arith.mulf %7, %7 : vector<8x1xf32>
    %12 = arith.divf %10, %11 : vector<8x1xf32>
    %cst_3 = arith.constant 1.000000e+00 : f32
    %13 = vector.broadcast %cst_3 : f32 to vector<8x1xf32>
    %14 = arith.subf %13, %12 : vector<8x1xf32>
    %15 = tpu.iota {dimensions = array<i32: 0>} : vector<8x1xi32>
    %c8_i32 = arith.constant 8 : i32
    %16 = arith.muli %arg0, %c8_i32 : i32
    %17 = vector.broadcast %16 : i32 to vector<8x1xi32>
    %18 = arith.addi %15, %17 : vector<8x1xi32>
    %c8_i32_4 = arith.constant 8 : i32
    %19 = vector.broadcast %c8_i32_4 : i32 to vector<8x1xi32>
    %20 = arith.cmpi slt, %18, %19 : vector<8x1xi32>
    %cst_5 = arith.constant 0.000000e+00 : f32
    %21 = vector.broadcast %cst_5 : f32 to vector<8x1xf32>
    %22 = arith.select %20, %14, %21 : vector<8x1xi1>, vector<8x1xf32>
    %23 = vector.shape_cast %22 : vector<8x1xf32> to vector<1x8x1xf32>
    %cst_6 = arith.constant dense<0.000000e+00> : vector<1xf32>
    %24 = vector.multi_reduction <add>, %23, %cst_6 [1, 2] : vector<1x8x1xf32> to vector<1xf32>
    %25 = vector.shape_cast %24 : vector<1xf32> to vector<1x1x1xf32>
    %26 = vector.extract %25[0, 0, 0] : f32 from vector<1x1x1xf32>
    %27 = vector.broadcast %26 : f32 to vector<1x8x128xf32>
    %c0_7 = arith.constant 0 : index
    %c0_8 = arith.constant 0 : index
    %c0_9 = arith.constant 0 : index
    %28 = vector.load %arg2[%c0_7, %c0_8, %c0_9] : memref<1x8x128xf32, #tpu.memory_space<vmem>>, vector<1x8x128xf32>
    tpu.vector_store %arg2[%c0_7, %c0_8, %c0_9], %27 {strides = array<i32>} : memref<1x8x128xf32, #tpu.memory_space<vmem>>, vector<1x8x128xf32>,
    return
  }
  func.func @transform_0(%arg0: i32) -> (i32, i32) {
    %c0_i32 = arith.constant 0 : i32
    %c0_i32_0 = arith.constant 0 : i32
    return %arg0, %c0_i32 : i32, i32
  }
  func.func @transform_1(%arg0: i32) -> (i32, i32, i32) {
    %c0_i32 = arith.constant 0 : i32
    %c0_i32_0 = arith.constant 0 : i32
    %c0_i32_1 = arith.constant 0 : i32
    return %arg0, %c0_i32, %c0_i32_0 : i32, i32, i32
  }
}

</mosaic_0001>

<llo_original>
// kernel: tpu_custom_call.1
$region0: #{tpu_custom_call.1}
  #allocation0 [shape = 'u32[]', space=smem, size = 0x4, offset = 0x4, fixed_abs, tag = 'smem constant byte address 0x4 - core index']
  #allocation1 [shape = 'u32[144,128]{1,0:T(1,128)}', space=vmem, size = 0x12000, scoped, tag = 'internal scratch']
  %s0 = inlined_call_operand.hbm [shape: f32[8,32], index: 0, kind: input, shape index: {}]
  %s1 = inlined_call_operand.hbm [shape: f32[1,8,128], index: 1, kind: output, shape index: {}]
  %s2 = sld [smem:[#allocation0]]
  $region18: #{tpu_custom_call.1} parent=0
    _
  %s4 = ssub.s32 1, %s2
  %s5 = scalar_select 0, %s4, %s2
  $region1: #{tpu_custom_call.1} parent=0
    #allocation2 [shape = 'u8[4096]{0}', space=vmem, size = 0x1000, scoped, tag = 'input window, operand 0, single buffered']
    #allocation3 [shape = 's32[1]{0}', space=sflag, size = 0x4, scoped, tag = 'scoped memory for tpu_custom_call.1']
    #allocation4 [shape = 's32[1]{0}', space=sflag, size = 0x4, scoped, tag = 'scoped memory for tpu_custom_call.1']
    #allocation5 [shape = 'u8[4096]{0}', space=vmem, size = 0x1000, scoped, tag = 'output window, operand 0, single buffered']
    %6 = vsyncpa [#allocation3], 0
    %7 = vsyncpa [#allocation4], 0
    // Predicated region
    $region2: #{tpu_custom_call.1} parent=1 // pred_check
      _
    $region3: #{tpu_custom_call.1} parent=1 // pred_check_branch
      %9 = sbr.rel (0) target = $region5
    $region4: #{tpu_custom_call.1} parent=1 // pred_region
      %s11 = ssub.s32 128, 128
      %12 = vsyncadd [#allocation3], %s11
      %s14 = sshll.u32 [#allocation2], 4
      %s15 = int_to_ptr.vmem [resolvable:$true] %s14
      %17 = dma.hbm_to_vmem [thread:$0]  %s0, 128, %s15, [#allocation3]
    $region5: #{tpu_custom_call.1} parent=1 // pred_fallthru
      _
    // Predicated region
    $region6: #{tpu_custom_call.1} parent=1 // pred_check
      _
    $region7: #{tpu_custom_call.1} parent=1 // pred_check_branch
      %19 = sbr.rel (0) target = $region9
    $region8: #{tpu_custom_call.1} parent=1 // pred_region
      %20 = dma.done [#allocation3], 128
    $region9: #{tpu_custom_call.1} parent=1 // pred_fallthru
      _
    %v21 = vld [vmem:[#allocation2] sm:$0xff]
    %vm22 = vcmask 261120
    %v23 = vsel %vm22, %v21, -inf
    %24 = vmax.xlane.f32.xlu0 %v23
    %v25 = vpop.xlane.xlu0 %24
    %v26 = vsub.f32 %v21, %v25
    %v27 = vmul.f32 %v26, 1.442695
    %v28 = vpow.pop %v27
    %v29 = vsel %vm22, %v28, 0.0
    %30 = vadd.xlane.f32.xlu0 %v29
    %v31 = vpop.xlane.xlu0 %30
    %v32 = vmul.f32 %v28, %v28
    %v33 = vsel %vm22, %v32, 0.0
    %34 = vadd.xlane.f32.xlu0 %v33
    %v35 = vpop.xlane.xlu0 %34
    %v36 = vmul.f32 %v31, %v31
    %v37 = vrcp.pop %v36
    %v38 = vmul.f32 %v35, %v37
    %v39 = vsub.f32 1.0, %v38
    %v40 = vlaneseq
    %v41 = vshrl.u32 %v40, 7
    %s42 = smul.u32 0, 8
    %v43 = vstv %s42
    %v44 = vadd.s32 %v41, %v43
    %vm45 = vcmp.lt.s32.totalorder %v44, 8
    %v46 = vsel %vm45, %v39, 0.0
    %vm47 = vcmask 7168
    %v48 = vsel %vm47, %v46, 0.0
    %49 = vadd.xlane.f32.xlu0 %v48
    %v50 = vpop.xlane.xlu0 %49
    %v51 = vrot.slane %v50, 4
    %v52 = vadd.f32 %v50, %v51
    %v53 = vrot.slane %v52, 2
    %v54 = vadd.f32 %v52, %v53
    %v55 = vrot.slane %v54, 1
    %v56 = vadd.f32 %v54, %v55
    %s57 = vtos %v56
    %v58 = vstv %s57
    %59 = vst [vmem:[#allocation5] sm:$0xff] %v58
    // Predicated region
    $region10: #{tpu_custom_call.1} parent=1 // pred_check
      _
    $region11: #{tpu_custom_call.1} parent=1 // pred_check_branch
      %61 = sbr.rel (0) target = $region13
    $region12: #{tpu_custom_call.1} parent=1 // pred_region
      %s63 = ssub.s32 128, 128
      %64 = vsyncadd [#allocation4], %s63
      %s66 = sshll.u32 [#allocation5], 4
      %s67 = int_to_ptr.vmem [resolvable:$true] %s66
      %69 = dma.vmem_to_hbm [thread:$0]  %s67, 128, %s1, [#allocation4]
    $region13: #{tpu_custom_call.1} parent=1 // pred_fallthru
      _
    // Predicated region
    $region14: #{tpu_custom_call.1} parent=1 // pred_check
      _
    $region15: #{tpu_custom_call.1} parent=1 // pred_check_branch
      %71 = sbr.rel (0) target = $region17
    $region16: #{tpu_custom_call.1} parent=1 // pred_region
      %72 = dma.done [#allocation4], 128
    $region17: #{tpu_custom_call.1} parent=1 // pred_fallthru
      _
    %73 = vsyncpa [#allocation3], 1
    %74 = vsyncpa [#allocation4], 1

</llo_original>
